<compile_context>
chip_gen: v5e
topology: v5e:2x2
jax: 0.10.0
libtpu: 0.0.40
codegen_flags: <defaults>
</compile_context>

<pallas_src>
import math

import jax
import jax.numpy as jnp
from jax.experimental import pallas as pl
from jax.experimental.pallas import tpu as pltpu


def _fused_sinusoidal_kernel(x_ref, w_ref, p_ref, o_ref):
    # x_ref: (tb, 1) f32, w_ref/p_ref: (1, out_dim) f32,
    # o_ref: (tb, out_dim) out_dtype with columns [x | sin(freqs) | cos(freqs)].
    x = x_ref[...].astype(jnp.float32)                        # (tb, 1)
    vals = x * w_ref[...].astype(jnp.float32) + p_ref[...].astype(jnp.float32)
    # Column 0 is the pass-through x (w=1, phase=0); everything else is a
    # phase-shifted sin. Single select (VPU) + single sin (EUP) over the row.
    lane = jax.lax.broadcasted_iota(jnp.int32, vals.shape, 1)
    out = jnp.where(lane == 0, vals, jnp.sin(vals))
    # One lane-dense store at offset 0 (ragged tail of out_dim is masked by
    # Pallas writeback - unavoidable since out_dim = 2*half_dim+1).
    o_ref[...] = out.astype(o_ref.dtype)


# Cap so double-buffered, 128-lane-padded (tb,1) x and (tb,out_dim) out blocks
# stay around ~16 MiB total: safe under v7x's 32 MiB scoped / 64 MiB physical VMEM.
_VMEM_ROW_CAP = 8192


def _choose_block_b(b, out_dim):
    """Batch tile: ~4 MiB of lane-padded output per grid step, sublane-aligned,
    v7x-VMEM-capped, and >=2 grid steps whenever b >= 16 (both v7x TCs busy)."""
    padded_cols = ((out_dim + 127) // 128) * 128   # narrow blocks pad to 128 lanes
    target = max(512, (4 * 1024 * 1024) // (padded_cols * 4))
    tb = min(target, _VMEM_ROW_CAP)
    if b >= 16:
        tb = min(tb, b // 2)                        # at least 2 grid steps
    tb = min(tb, b)
    if tb < b:
        tb = max(8, (tb // 8) * 8)                  # (8,128) rule for partial blocks
    return tb


def prepare_params(weights):
    """Fold 2*pi and the sin/cos fusion constants into derived parameters.

    weights: (1, half_dim) raw randn parameter, exactly as in the PyTorch module.
    Returns (w_all, phase_all), each (1, 2*half_dim + 1) f32.
    """
    assert weights.ndim == 2 and weights.shape[0] == 1
    half = weights.shape[1]
    w2pi = weights.astype(jnp.float32) * (2.0 * math.pi)
    w_all = jnp.concatenate(
        [jnp.ones((1, 1), jnp.float32), w2pi, w2pi], axis=-1)
    phase_all = jnp.concatenate(
        [jnp.zeros((1, 1 + half), jnp.float32),
         jnp.full((1, half), 0.5 * math.pi, jnp.float32)], axis=-1)
    return w_all, phase_all


def learned_sinusoidal_embedding(x, w_all, phase_all, *, out_dtype=jnp.float32):
    """x: (B,) f32 timesteps; w_all/phase_all from prepare_params().

    Returns (B, 2*half_dim + 1) = [x | sin(x*w*2pi) | cos(x*w*2pi)].
    """
    assert x.ndim == 1
    assert w_all.shape == phase_all.shape and w_all.shape[0] == 1
    b = x.shape[0]
    out_dim = w_all.shape[1]

    x2d = x.reshape(b, 1).astype(jnp.float32)
    tb = _choose_block_b(b, out_dim)
    grid = (pl.cdiv(b, tb),)

    return pl.pallas_call(
        _fused_sinusoidal_kernel,
        out_shape=jax.ShapeDtypeStruct((b, out_dim), out_dtype),
        grid_spec=pltpu.PrefetchScalarGridSpec(
            num_scalar_prefetch=0,
            grid=grid,
            in_specs=[
                pl.BlockSpec((tb, 1), lambda i: (i, 0)),
                pl.BlockSpec((1, out_dim), lambda i: (0, 0)),
                pl.BlockSpec((1, out_dim), lambda i: (0, 0)),
            ],
            out_specs=pl.BlockSpec((tb, out_dim), lambda i: (i, 0)),
        ),
        compiler_params=pltpu.CompilerParams(
            dimension_semantics=("parallel",),
        ),
    )(x2d, w_all, phase_all)


def _reference(x, weights):
    # Matches the PyTorch module exactly (raw weights, 2*pi applied in forward).
    xr = x[:, None]
    freqs = xr * weights * (2.0 * jnp.pi)
    return jnp.concatenate((xr, jnp.sin(freqs), jnp.cos(freqs)), axis=-1)


if __name__ == "__main__":
    key = jax.random.PRNGKey(0)
    k_x, k_w = jax.random.split(key)

    dim = 16                      # embedding dim (must be even)
    half_dim = dim // 2
    batch = 8

    # Parameter init (matches torch.randn(half_dim).unsqueeze(0) shape).
    weights = jax.random.normal(k_w, (1, half_dim), dtype=jnp.float32)
    # One-time derived-parameter construction (2*pi fold + sin/cos fusion row).
    w_all, phase_all = prepare_params(weights)

    # Continuous diffusion timesteps in [0, 1).
    x = jax.random.uniform(k_x, (batch,), dtype=jnp.float32)

    out = learned_sinusoidal_embedding(x, w_all, phase_all)
    out = jax.block_until_ready(out)

    ref = _reference(x, weights)
    assert out.shape == (batch, dim + 1), out.shape
    assert jnp.allclose(out, ref, atol=1e-5, rtol=1e-5), "mismatch vs reference"

    print("KERNEL_OK")
</pallas_src>

<mosaic_0001>
module attributes {stable_mosaic.version = 11 : i64} {
  func.func @_fused_sinusoidal_kernel(%arg0: i32, %arg1: memref<8x1xf32, #tpu.memory_space<vmem>>, %arg2: memref<1x17xf32, #tpu.memory_space<vmem>>, %arg3: memref<1x17xf32, #tpu.memory_space<vmem>>, %arg4: memref<8x17xf32, #tpu.memory_space<vmem>>) attributes {dimension_semantics = [#tpu.dimension_semantics<parallel>], iteration_bounds = array<i64: 1>, scalar_prefetch = 0 : i64, scratch_operands = 0 : i64, tpu.core_type = #tpu.core_type<tc>, window_params = [{transform_indices = @transform_0, window_bounds = array<i64: 8, 1>}, {pipeline_mode = #tpu.pipeline_mode<synchronous>, transform_indices = @transform_1, window_bounds = array<i64: 1, 17>}, {pipeline_mode = #tpu.pipeline_mode<synchronous>, transform_indices = @transform_2, window_bounds = array<i64: 1, 17>}, {transform_indices = @transform_3, window_bounds = array<i64: 8, 17>}]} {
    %c0 = arith.constant 0 : index
    %c0_0 = arith.constant 0 : index
    %0 = vector.load %arg1[%c0, %c0_0] : memref<8x1xf32, #tpu.memory_space<vmem>>, vector<8x1xf32>
    %c0_1 = arith.constant 0 : index
    %c0_2 = arith.constant 0 : index
    %1 = vector.load %arg2[%c0_1, %c0_2] : memref<1x17xf32, #tpu.memory_space<vmem>>, vector<1x17xf32>
    %2 = vector.broadcast %0 : vector<8x1xf32> to vector<8x17xf32>
    %3 = vector.broadcast %1 : vector<1x17xf32> to vector<8x17xf32>
    %4 = arith.mulf %2, %3 : vector<8x17xf32>
    %c0_3 = arith.constant 0 : index
    %c0_4 = arith.constant 0 : index
    %5 = vector.load %arg3[%c0_3, %c0_4] : memref<1x17xf32, #tpu.memory_space<vmem>>, vector<1x17xf32>
    %6 = vector.broadcast %5 : vector<1x17xf32> to vector<8x17xf32>
    %7 = arith.addf %4, %6 : vector<8x17xf32>
    %8 = tpu.iota {dimensions = array<i32: 1>} : vector<8x17xi32>
    %c0_i32 = arith.constant 0 : i32
    %9 = vector.broadcast %c0_i32 : i32 to vector<8x17xi32>
    %10 = arith.cmpi eq, %8, %9 : vector<8x17xi32>
    %11 = math.sin %7 : vector<8x17xf32>
    %12 = arith.select %10, %7, %11 : vector<8x17xi1>, vector<8x17xf32>
    %c0_5 = arith.constant 0 : index
    %c0_6 = arith.constant 0 : index
    %13 = vector.load %arg4[%c0_5, %c0_6] : memref<8x17xf32, #tpu.memory_space<vmem>>, vector<8x17xf32>
    tpu.vector_store %arg4[%c0_5, %c0_6], %12 {strides = array<i32>} : memref<8x17xf32, #tpu.memory_space<vmem>>, vector<8x17xf32>,
    return
  }
  func.func @transform_0(%arg0: i32) -> (i32, i32) {
    %c0_i32 = arith.constant 0 : i32
    %c0_i32_0 = arith.constant 0 : i32
    return %arg0, %c0_i32 : i32, i32
  }
  func.func @transform_1(%arg0: i32) -> (i32, i32) {
    %c0_i32 = arith.constant 0 : i32
    %c0_i32_0 = arith.constant 0 : i32
    %c0_i32_1 = arith.constant 0 : i32
    return %c0_i32, %c0_i32_0 : i32, i32
  }
  func.func @transform_2(%arg0: i32) -> (i32, i32) {
    %c0_i32 = arith.constant 0 : i32
    %c0_i32_0 = arith.constant 0 : i32
    %c0_i32_1 = arith.constant 0 : i32
    return %c0_i32, %c0_i32_0 : i32, i32
  }
  func.func @transform_3(%arg0: i32) -> (i32, i32) {
    %c0_i32 = arith.constant 0 : i32
    %c0_i32_0 = arith.constant 0 : i32
    return %arg0, %c0_i32 : i32, i32
  }
}

</mosaic_0001>

<llo_original>
// kernel: tpu_custom_call.1
$region0: #{tpu_custom_call.1}
  #allocation0 [shape = 'u32[]', space=smem, size = 0x4, offset = 0x4, fixed_abs, tag = 'smem constant byte address 0x4 - core index']
  #allocation1 [shape = 'u32[72,128]{1,0:T(1,128)}', space=vmem, size = 0x9000, scoped, tag = 'internal scratch']
  %s0 = inlined_call_operand.vmem [shape: f32[8,1], index: 0, kind: input, shape index: {}]
  %s1 = inlined_call_operand.vmem [shape: f32[1,17], index: 1, kind: input, shape index: {}]
  %s2 = inlined_call_operand.vmem [shape: f32[1,17], index: 2, kind: input, shape index: {}]
  %s3 = inlined_call_operand.hbm [shape: f32[8,17], index: 3, kind: output, shape index: {}]
  %s4 = sld [smem:[#allocation0]]
  $region22: #{tpu_custom_call.1} parent=0
    _
  %s6 = ssub.s32 1, %s4
  %s7 = scalar_select 0, %s6, %s4
  $region1: #{tpu_custom_call.1} parent=0
    #allocation2 [shape = 'u8[4096]{0}', space=vmem, size = 0x1000, scoped, tag = 'output window, operand 0, single buffered']
    #allocation3 [shape = 's32[1]{0}', space=sflag, size = 0x4, scoped, tag = 'scoped memory for tpu_custom_call.1']
    %8 = vsyncpa [#allocation3], 0
    // Predicated region
    $region2: #{tpu_custom_call.1} parent=1 // pred_check
      _
    $region3: #{tpu_custom_call.1} parent=1 // pred_check_branch
      %10 = sbr.rel (0) target = $region5
    $region4: #{tpu_custom_call.1} parent=1 // pred_region
      _
    $region5: #{tpu_custom_call.1} parent=1 // pred_fallthru
      _
    // Predicated region
    $region6: #{tpu_custom_call.1} parent=1 // pred_check
      _
    $region7: #{tpu_custom_call.1} parent=1 // pred_check_branch
      %12 = sbr.rel (0) target = $region9
    $region8: #{tpu_custom_call.1} parent=1 // pred_region
      _
    $region9: #{tpu_custom_call.1} parent=1 // pred_fallthru
      _
    // Predicated region
    $region10: #{tpu_custom_call.1} parent=1 // pred_check
      _
    $region11: #{tpu_custom_call.1} parent=1 // pred_check_branch
      %14 = sbr.rel (0) target = $region13
    $region12: #{tpu_custom_call.1} parent=1 // pred_region
      _
    $region13: #{tpu_custom_call.1} parent=1 // pred_fallthru
      _
    %v15 = vld [vmem:[%s0] sm:$0xff]
    %v16 = vld [vmem:[%s1] sm:$0x1]
    %18 = vset.pattern.permute.xlu0 0
    %19 = vperm.xlu0 %18, %v15
    %v20 = vpop.permute.xlu0 %19
    %v23 = vperm.slane %v16, 0
    %v25 = vmul.f32 %v20, %v23
    %v26 = vld [vmem:[%s2] sm:$0x1]
    %v28 = vperm.slane %v26, 0
    %v30 = vadd.f32 %v25, %v28
    %v31 = vlaneseq
    %v32 = vand.u32 %v31, 127
    %vm33 = vcmp.eq.s32.totalorder %v32, 0
    %v34 = vand.u32 2147483647, %v30
    %vm35 = vcmp.le.f32.partialorder %v34, 0.7853982
    %vm36 = vcmp.lt.s32.totalorder %v30, 0
    %v37 = vand.u32 %v30, 2139095040
    %v38 = vshrl.u32 %v37, 23
    %v39 = vsub.s32 %v38, 127
    %v40 = vand.u32 2147483647, %v30
    %v41 = vand.u32 %v40, 8388607
    %v42 = vor.u32 %v41, 8388608
    %v43 = vsub.s32 0, %v42
    %v44 = vadd.s32 %v39, 1
    %vm45 = vcmp.gt.s32.totalorder %v44, 0
    %v46 = vsel %vm45, %v44, 0
    %v47 = vshrl.u32 %v46, 5
    %v48 = vand.u32 %v46, 31
    %v49 = vsub.s32 32, %v48
    %v50 = vshrl.u32 683565275, %v49
    %v51 = vshll.u32 683565275, %v48
    %v52 = vshrl.u32 2475754826, %v49
    %v53 = vor.u32 %v51, %v52
    %v54 = vshll.u32 2475754826, %v48
    %v55 = vshrl.u32 2131351028, %v49
    %v56 = vor.u32 %v54, %v55
    %v57 = vshll.u32 2131351028, %v48
    %v58 = vshrl.u32 2102212464, %v49
    %v59 = vor.u32 %v57, %v58
    %v60 = vshll.u32 2102212464, %v48
    %v61 = vshrl.u32 920167782, %v49
    %v62 = vor.u32 %v60, %v61
    %v63 = vshll.u32 920167782, %v48
    %v64 = vshrl.u32 1326507024, %v49
    %v65 = vor.u32 %v63, %v64
    %vm66 = vcmp.lt.s32.totalorder %v47, 1
    %vm67 = vcmp.lt.s32.totalorder %v47, 2
    %vm68 = vcmp.lt.s32.totalorder %v47, 3
    %vm69 = vcmp.lt.s32.totalorder %v47, 4
    %v70 = vsel %vm66, %v50, %v53
    %v71 = vsel %vm69, %v59, 2102212464
    %v72 = vsel %vm68, %v56, %v71
    %v73 = vsel %vm67, %v70, %v72
    %v74 = vsel %vm66, %v53, %v56
    %v75 = vsel %vm69, %v62, 920167782
    %v76 = vsel %vm68, %v59, %v75
    %v77 = vsel %vm67, %v74, %v76
    %v78 = vsel %vm66, %v56, %v59
    %v79 = vsel %vm69, %v65, 1326507024
    %v80 = vsel %vm68, %v62, %v79
    %v81 = vsel %vm67, %v78, %v80
    %v82 = vshll.u32 %v42, 8
    %v83 = vand.u32 %v82, 65535
    %v84 = vshrl.u32 %v82, 16
    %v85 = vand.u32 %v81, 65535
    %v86 = vshrl.u32 %v81, 16
    %v87 = vmul.u32 %v83, %v85
    %v88 = vmul.u32 %v83, %v86
    %v89 = vmul.u32 %v84, %v85
    %v90 = vmul.u32 %v84, %v86
    %v91 = vshll.u32 %v88, 16
    %v92 = vshrl.u32 %v88, 16
    %v93 = vshll.u32 %v89, 16
    %v94 = vshrl.u32 %v89, 16
    %vm95 = vc.u32 %v87, %v91
    %v96 = vsel %vm95, 1, 0
    %v97 = vadd.s32 %v87, %v91
    %v98 = vadd.s32 %v90, %v96
    %vm99 = vc.u32 %v97, %v93
    %v100 = vsel %vm99, 1, 0
    %v101 = vadd.s32 %v97, %v93
    %v102 = vadd.s32 %v98, %v100
    %v103 = vadd.s32 %v102, %v92
    %v104 = vadd.s32 %v103, %v94
    %v105 = vand.u32 %v82, 65535
    %v106 = vshrl.u32 %v82, 16
    %v107 = vand.u32 %v77, 65535
    %v108 = vshrl.u32 %v77, 16
    %v109 = vmul.u32 %v105, %v107
    %v110 = vmul.u32 %v105, %v108
    %v111 = vmul.u32 %v106, %v107
    %v112 = vmul.u32 %v106, %v108
    %v113 = vshll.u32 %v110, 16
    %v114 = vshrl.u32 %v110, 16
    %v115 = vshll.u32 %v111, 16
    %v116 = vshrl.u32 %v111, 16
    %vm117 = vc.u32 %v109, %v113
    %v118 = vsel %vm117, 1, 0
    %v119 = vadd.s32 %v109, %v113
    %v120 = vadd.s32 %v112, %v118
    %vm121 = vc.u32 %v119, %v115
    %v122 = vsel %vm121, 1, 0
    %v123 = vadd.s32 %v119, %v115
    %v124 = vadd.s32 %v120, %v122
    %v125 = vadd.s32 %v124, %v114
    %v126 = vadd.s32 %v125, %v116
    %v127 = vmul.u32 %v82, %v73
    %v128 = vadd.s32 %v104, %v123
    %vm129 = vc.u32 %v104, %v123
    %v130 = vadd.s32 %v126, 1
    %v131 = vsel %vm129, %v130, %v126
    %v132 = vadd.s32 %v127, %v131
    %v133 = vadd.s32 %v132, 536870912
    %v134 = vshrl.u32 %v133, 30
    %v135 = vshll.u32 %v134, 30
    %v136 = vsub.s32 %v132, %v135
    %vm137 = vcmp.lt.s32.totalorder %v136, 0
    %v138 = vsub.s32 0, %v136
    %v139 = vsel %vm137, %v138, %v136
    %v140 = vclz %v139
    %v141 = vsub.s32 %v140, 2
    %vm142 = vcmp.gt.s32.totalorder 0, %v141
    %v143 = vsel %vm142, 0, %v141
    %v144 = vsub.s32 32, %v143
    %v145 = vshll.u32 %v136, %v143
    %v146 = vshrl.u32 %v128, %v144
    %v147 = vor.u32 %v145, %v146
    %v148 = vsub.s32 4294967266, %v143
    %v149 = vadd.s32 %v148, 127
    %v150 = vshll.u32 %v149, 23
    %v151 = vor.u32 4788187, %v150
    %v152 = vand.u32 2147483647, %v151
    %v154 = vcvt.s32.f32 %v147
    %v155 = vmul.f32 %v154, %v152
    %v156 = vxor.u32 %v155, 2147483648
    %v157 = vsel %vm36, %v156, %v155
    %v158 = vsub.s32 4, %v134
    %v159 = vsel %vm36, %v158, %v134
    %v160 = vsel %vm35, %v30, %v157
    %v161 = vsel %vm35, 0, %v159
    %v162 = vmul.f32 %v160, %v160
    %v163 = vmul.f32 %v162, -0.001358992
    %v164 = vadd.f32 %v163, 0.041655596
    %v165 = vmul.f32 %v162, %v164
    %v166 = vadd.f32 %v165, -0.4999988
    %v167 = vmul.f32 %v162, %v166
    %v168 = vadd.f32 1.0, %v167
    %v169 = vmul.f32 %v160, %v160
    %v170 = vmul.f32 %v169, -0.00019511016
    %v171 = vadd.f32 %v170, 0.008332121
    %v172 = vmul.f32 %v169, %v171
    %v173 = vadd.f32 %v172, -0.16666654
    %v174 = vmul.f32 %v169, %v173
    %v175 = vadd.f32 %v174, 1.0
    %v176 = vmul.f32 %v175, %v160
    %vm177 = vweird.f32 %v30
    %v178 = vadd.s32 %v161, 3
    %v179 = vand.u32 %v178, 3
    %vm180 = vcmp.lt.s32.totalorder %v179, 2
    %vm181 = vcmp.eq.s32.totalorder %v179, 0
    %v182 = vxor.u32 %v176, 2147483648
    %v183 = vsel %vm181, %v168, %v182
    %vm184 = vcmp.eq.s32.totalorder %v179, 2
    %v185 = vxor.u32 %v168, 2147483648
    %v186 = vsel %vm184, %v185, %v176
    %v187 = vsel %vm180, %v183, %v186
    %v188 = vsel %vm177, nan, %v187
    %v189 = vsel %vm33, %v30, %v188
    %vm190 = vcmask 138240
    %191 = vst.msk [vmem:[#allocation2] sm:$0xff] %vm190, %v189
    // Predicated region
    $region14: #{tpu_custom_call.1} parent=1 // pred_check
      _
    $region15: #{tpu_custom_call.1} parent=1 // pred_check_branch
      %193 = sbr.rel (0) target = $region17
    $region16: #{tpu_custom_call.1} parent=1 // pred_region
      %195 = vsyncadd [#allocation3], 0
      %s197 = sshll.u32 [#allocation2], 4
      %s198 = int_to_ptr.vmem [resolvable:$true] %s197
      %s199 = sshll.u32 %s3, 4
      %s200 = int_to_ptr.hbm [resolvable:$true] %s199
      %202 = dma.vmem_to_hbm [thread:$0]  %s198, 128, %s200, [#allocation3]
    $region17: #{tpu_custom_call.1} parent=1 // pred_fallthru
      _
    // Predicated region
    $region18: #{tpu_custom_call.1} parent=1 // pred_check
      _
    $region19: #{tpu_custom_call.1} parent=1 // pred_check_branch
      %204 = sbr.rel (0) target = $region21
    $region20: #{tpu_custom_call.1} parent=1 // pred_region
      %206 = dma.done [#allocation3], 128
    $region21: #{tpu_custom_call.1} parent=1 // pred_fallthru
      _
    %207 = vsyncpa [#allocation3], 1

</llo_original>
